<compile_context>
chip_gen: v6e
topology: v6e:2x2x1
jax: 0.10.0
libtpu: 0.0.40
codegen_flags: <defaults>
</compile_context>

<pallas_src>
import numpy as np
import jax
import jax.numpy as jnp
from jax import lax
from jax.experimental import pallas as pl
from jax.experimental.pallas import tpu as pltpu

_LANE = 128
_SUBLANE = 8
_GRANULE = _SUBLANE * _LANE          # 1024 batch elements = one (8,128) f32 vreg


def _round_up(x, m):
    return ((x + m - 1) // m) * m


def _einsum_str(inds_l, inds_r, inds_o):
    """Reproduce the einsum string built in TensorProdBare.__init__."""
    assert (inds_l + inds_r - inds_o) % 2 == 0, 'parity mismatch'
    contracts = (inds_l + inds_r - inds_o) // 2
    assert 0 <= contracts <= min(inds_l, inds_r)
    tensor_indices = ''.join(chr(ord('i') + n)
                             for n in range(inds_l + inds_r - contracts))
    to_contract = tensor_indices[:contracts]
    keep_l = tensor_indices[contracts:inds_l]
    keep_r = tensor_indices[inds_l:]
    return f'...{keep_l + to_contract},...{keep_r + to_contract}->...{keep_l + keep_r}'


def _tpu_generation():
    """Best-effort TPU generation from device_kind (fallback: 6)."""
    try:
        kind = jax.devices()[0].device_kind.lower()
    except Exception:
        return 6
    for gen, keys in ((7, ("v7", "7x")), (6, ("v6",)), (5, ("v5",)), (4, ("v4",))):
        if any(k in kind for k in keys):
            return gen
    return 6


def _choose_tile(N, bytes_per_n, gen):
    """TN = batch elements per grid step (multiple of 1024), generation-aware."""
    if gen >= 7:      # 64 MiB physical / 32 MiB default-scoped VMEM, ~3.2 TB/s HBM
        budget, cap = 26 << 20, 128 * 1024
    elif gen == 6:    # 128 MiB physical / 32 MiB default-scoped, ~1.4 TB/s HBM
        budget, cap = 24 << 20, 64 * 1024
    else:             # v5e & older: 16 MiB default-scoped, ~0.82 TB/s HBM
        budget, cap = 13 << 20, 32 * 1024
    tn = budget // (2 * max(1, bytes_per_n))          # double-buffered working set
    tn = min(tn, cap)
    tn = max(_GRANULE, (tn // _GRANULE) * _GRANULE)
    n_full = _round_up(N, _GRANULE)
    tn = min(tn, n_full)                              # never (much) bigger than the problem
    # v7x megacore: avoid a 1-step grid when the problem is splittable across the 2 TCs.
    if gen >= 7 and tn >= n_full and n_full >= 2 * _GRANULE:
        tn = _round_up(n_full // 2, _GRANULE)
    return tn


def _choose_chunk(sub, min_itemsize):
    """Strip-mine chunk (sublanes): exactly one packed vreg for the narrowest dtype."""
    ch = _SUBLANE * max(1, 4 // int(min_itemsize))    # f32->8, bf16->16, int8/fp8->32
    ch = min(ch, sub)
    while sub % ch:
        ch //= 2
    return max(ch, 1)


# ---------------------------------------------------------------------------
# Kernel.  Refs (per grid step):
#   l_ref : (K_L*C, SUB, 128)   r_ref : (K_R*C, SUB, 128)   o_ref : (K_L*K_R, SUB, 128)
# The last two dims of every block are dense batch tiles; the tiny keep/contract indices
# live on the leading (full-extent) dim and are addressed with static ints.
# ---------------------------------------------------------------------------
def _make_kernel(K_L, K_R, C, n_chunks, CH, acc_dtype):
    # Hoisting the full l/r slabs for one chunk costs ~(K_L*C + K_R*C) * CH/8 live vregs
    # after the cast to the accumulation dtype.  Guard vreg pressure for larger index
    # configurations by switching to per-row VMEM reads (3 vld/cycle makes those cheap).
    hoist = (K_L * C + K_R * C) * max(1, CH // _SUBLANE) <= 40

    def kernel(l_ref, r_ref, o_ref):
        def chunk_body(ci):
            if isinstance(ci, int):
                s0 = ci * CH
            else:
                s0 = pl.multiple_of(ci * CH, CH)
            rows = pl.ds(s0, CH)
            if hoist:
                l = l_ref[:, rows, :].astype(acc_dtype)
                r = r_ref[:, rows, :].astype(acc_dtype)
                lrow = lambda i: l[i]
                rrow = lambda i: r[i]
            else:
                lrow = lambda i: l_ref[i, rows, :].astype(acc_dtype)
                rrow = lambda i: r_ref[i, rows, :].astype(acc_dtype)
            for a in range(K_L):
                for b in range(K_R):
                    acc = lrow(a * C) * rrow(b * C)
                    for c in range(1, C):
                        acc = acc + lrow(a * C + c) * rrow(b * C + c)
                    o_ref[a * K_R + b, rows, :] = acc.astype(o_ref.dtype)

        if n_chunks <= 8:
            # Short fixed trip count: fully unroll with static slice starts.
            for ci in range(n_chunks):
                chunk_body(ci)
        else:
            # Partial unroll: lets the scheduler overlap chunk i+1 loads with chunk i
            # compute/stores without blowing up code size.
            def loop_body(ci, carry):
                chunk_body(ci)
                return carry
            lax.fori_loop(0, n_chunks, loop_body, 0, unroll=4)

    return kernel


def _tensor_prod_call(xl3, xr3, K_L, K_R, C, TN, out_dtype, gen):
    """Core pallas_call on packed (rows, n_sub, 128) operands."""
    n_sub = xl3.shape[1]
    N_pad = n_sub * _LANE
    assert N_pad % TN == 0
    SUB = TN // _LANE

    min_itemsize = min(xl3.dtype.itemsize, xr3.dtype.itemsize,
                       jnp.dtype(out_dtype).itemsize)
    CH = _choose_chunk(SUB, min_itemsize)
    acc_dtype = (jnp.float32
                 if (jnp.issubdtype(xl3.dtype, jnp.floating)
                     and jnp.issubdtype(xr3.dtype, jnp.floating))
                 else jnp.int32)

    kernel = _make_kernel(K_L, K_R, C, SUB // CH, CH, acc_dtype)

    compiler_params = pltpu.CompilerParams(
        dimension_semantics=("parallel",),
        # Raise the scoped-VMEM limit explicitly on v6e/v7x so the generation-aware tile
        # budgets (<=~26 MiB double-buffered) always fit; v5e & older stay on the default
        # (their budget is 13 MiB, under the 16 MiB default scoped limit).
        vmem_limit_bytes=(32 * 1024 * 1024 if gen >= 6 else None),
    )

    return pl.pallas_call(
        kernel,
        out_shape=jax.ShapeDtypeStruct((K_L * K_R, n_sub, _LANE), out_dtype),
        grid_spec=pltpu.PrefetchScalarGridSpec(
            num_scalar_prefetch=0,
            grid=(N_pad // TN,),
            in_specs=[
                pl.BlockSpec((K_L * C, SUB, _LANE), lambda n: (0, n, 0)),
                pl.BlockSpec((K_R * C, SUB, _LANE), lambda n: (0, n, 0)),
            ],
            out_specs=pl.BlockSpec((K_L * K_R, SUB, _LANE), lambda n: (0, n, 0)),
        ),
        compiler_params=compiler_params,
    )(xl3, xr3)


def tensor_prod_bare_packed(xl, xr, K_L, K_R, C, out_dtype=None):
    """Canonical-layout entry point (no wrapper transposes).

    xl: (K_L*C, Np), xr: (K_R*C, Np) with Np a multiple of 1024; returns (K_L*K_R, Np).
    Use this (rows, N) layout between ops so the pack/unpack passes of
    `tensor_prod_bare` disappear in a real model.
    """
    KCl, Np = xl.shape
    KCr, Np_r = xr.shape
    assert KCl == K_L * C and KCr == K_R * C and Np == Np_r
    assert Np % _GRANULE == 0, 'packed batch length must be a multiple of 1024'
    if out_dtype is None:
        out_dtype = jnp.result_type(xl.dtype, xr.dtype)

    gen = _tpu_generation()
    bytes_per_n = (K_L * C * xl.dtype.itemsize + K_R * C * xr.dtype.itemsize
                   + K_L * K_R * jnp.dtype(out_dtype).itemsize)
    TN = _choose_tile(Np, bytes_per_n, gen)
    # TN must divide Np: drop to the largest multiple-of-1024 divisor of Np.
    m = Np // _GRANULE
    d = min(m, TN // _GRANULE)
    while m % d:
        d -= 1
    TN = d * _GRANULE

    n_sub = Np // _LANE
    out3 = _tensor_prod_call(xl.reshape(K_L * C, n_sub, _LANE),
                             xr.reshape(K_R * C, n_sub, _LANE),
                             K_L, K_R, C, TN, out_dtype, gen)
    return out3.reshape(K_L * K_R, Np)


def tensor_prod_bare(x_l, x_r, inds_l, inds_r, inds_o):
    """Pallas implementation of TensorProdBare(inds_l, inds_r, inds_o)(x_l, x_r).

    Matches the PyTorch module's (batch..., keep, contract) layout.
    """
    # TODO(synk): in a real model keep the (rows, N) canonical layout between ops
    # (tensor_prod_bare_packed) so these full-HBM-pass pack/unpack transposes around a
    # bandwidth-bound kernel fuse away with the neighbouring ops.
    assert (inds_l + inds_r - inds_o) % 2 == 0, 'parity mismatch'
    contracts = (inds_l + inds_r - inds_o) // 2
    assert 0 <= contracts <= min(inds_l, inds_r)
    keep_l = inds_l - contracts
    keep_r = inds_r - contracts

    batch_shape = x_l.shape[:x_l.ndim - inds_l]
    assert x_r.shape[:x_r.ndim - inds_r] == batch_shape, 'batch dims must match'
    dims_l = x_l.shape[x_l.ndim - inds_l:]
    dims_r = x_r.shape[x_r.ndim - inds_r:]
    keep_l_dims, con_l_dims = dims_l[:keep_l], dims_l[keep_l:]
    keep_r_dims, con_r_dims = dims_r[:keep_r], dims_r[keep_r:]
    assert con_l_dims == con_r_dims, 'contracted dims must match'

    K_L = int(np.prod(keep_l_dims, dtype=np.int64)) if keep_l_dims else 1
    K_R = int(np.prod(keep_r_dims, dtype=np.int64)) if keep_r_dims else 1
    C = int(np.prod(con_l_dims, dtype=np.int64)) if con_l_dims else 1
    N = int(np.prod(batch_shape, dtype=np.int64)) if batch_shape else 1

    out_dtype = jnp.result_type(x_l.dtype, x_r.dtype)
    gen = _tpu_generation()
    bytes_per_n = (K_L * C * x_l.dtype.itemsize + K_R * C * x_r.dtype.itemsize
                   + K_L * K_R * jnp.dtype(out_dtype).itemsize)
    TN = _choose_tile(N, bytes_per_n, gen)
    N_pad = _round_up(N, TN)
    n_sub = N_pad // _LANE

    def pack(x, k_keep):
        x2 = x.reshape(N, k_keep * C)
        if N_pad != N:
            x2 = jnp.pad(x2, ((0, N_pad - N), (0, 0)))   # fuses with the transpose below
        return x2.T.reshape(k_keep * C, n_sub, _LANE)

    out3 = _tensor_prod_call(pack(x_l, K_L), pack(x_r, K_R),
                             K_L, K_R, C, TN, out_dtype, gen)

    out = out3.reshape(K_L * K_R, N_pad).T[:N]            # (N, K_L*K_R)
    return out.reshape(*batch_shape, *keep_l_dims, *keep_r_dims)


if __name__ == "__main__":
    key = jax.random.PRNGKey(0)
    dim = 3   # physical index dimension (3D vectors / tensors)

    fn = jax.jit(tensor_prod_bare, static_argnums=(2, 3, 4))

    configs = [
        # (batch_shape, inds_l, inds_r, inds_o, dtype)
        ((2, 128), 2, 2, 2, jnp.float32),    # '...ji,...ki->...jk'  one contraction
        ((2, 128), 1, 1, 0, jnp.float32),    # '...i,...i->...'      full dot product
        ((2, 128), 1, 1, 2, jnp.float32),    # '...i,...j->...ij'    outer product
        ((2, 128), 3, 3, 2, jnp.float32),    # bigger index config -> per-row read path
        ((4, 4096), 2, 2, 2, jnp.float32),   # larger batch -> fori_loop(unroll=4) path
        ((2, 2048), 2, 2, 2, jnp.bfloat16),  # bf16 -> CH=16 packed-vreg chunks
    ]

    ok = True
    for (bshape, il, ir, io, dt) in configs:
        k1, k2, key = jax.random.split(key, 3)
        x_l = jax.random.normal(k1, bshape + (dim,) * il, dtype=jnp.float32).astype(dt)
        x_r = jax.random.normal(k2, bshape + (dim,) * ir, dtype=jnp.float32).astype(dt)

        y = jax.block_until_ready(fn(x_l, x_r, il, ir, io))
        y_ref = jnp.einsum(_einsum_str(il, ir, io),
                           x_l.astype(jnp.float32), x_r.astype(jnp.float32))

        tol = 1e-5 if dt == jnp.float32 else 2e-2
        if (y.shape != y_ref.shape or
                not np.allclose(np.asarray(y, dtype=np.float32), np.asarray(y_ref),
                                rtol=tol, atol=tol)):
            ok = False

    if ok:
        print("KERNEL_OK")
</pallas_src>

<mosaic_0001>
module attributes {stable_mosaic.version = 11 : i64} {
  func.func @kernel(%arg0: i32, %arg1: memref<9x8x128xf32, #tpu.memory_space<vmem>>, %arg2: memref<9x8x128xf32, #tpu.memory_space<vmem>>, %arg3: memref<9x8x128xf32, #tpu.memory_space<vmem>>) attributes {dimension_semantics = [#tpu.dimension_semantics<parallel>], iteration_bounds = array<i64: 1>, scalar_prefetch = 0 : i64, scratch_operands = 0 : i64, tpu.core_type = #tpu.core_type<tc>, window_params = [{transform_indices = @transform_0, window_bounds = array<i64: 9, 8, 128>}, {transform_indices = @transform_1, window_bounds = array<i64: 9, 8, 128>}, {transform_indices = @transform_2, window_bounds = array<i64: 9, 8, 128>}]} {
    %c0 = arith.constant 0 : index
    %c0_0 = arith.constant 0 : index
    %c0_1 = arith.constant 0 : index
    %0 = vector.load %arg1[%c0, %c0_0, %c0_1] : memref<9x8x128xf32, #tpu.memory_space<vmem>>, vector<9x8x128xf32>
    %c0_2 = arith.constant 0 : index
    %c0_3 = arith.constant 0 : index
    %c0_4 = arith.constant 0 : index
    %1 = vector.load %arg2[%c0_2, %c0_3, %c0_4] : memref<9x8x128xf32, #tpu.memory_space<vmem>>, vector<9x8x128xf32>
    %2 = vector.extract_strided_slice %0 {offsets = [0, 0, 0], sizes = [1, 8, 128], strides = [1, 1, 1]} : vector<9x8x128xf32> to vector<1x8x128xf32>
    %3 = vector.shape_cast %2 : vector<1x8x128xf32> to vector<8x128xf32>
    %4 = vector.extract_strided_slice %1 {offsets = [0, 0, 0], sizes = [1, 8, 128], strides = [1, 1, 1]} : vector<9x8x128xf32> to vector<1x8x128xf32>
    %5 = vector.shape_cast %4 : vector<1x8x128xf32> to vector<8x128xf32>
    %6 = arith.mulf %3, %5 : vector<8x128xf32>
    %7 = vector.extract_strided_slice %0 {offsets = [1, 0, 0], sizes = [1, 8, 128], strides = [1, 1, 1]} : vector<9x8x128xf32> to vector<1x8x128xf32>
    %8 = vector.shape_cast %7 : vector<1x8x128xf32> to vector<8x128xf32>
    %9 = vector.extract_strided_slice %1 {offsets = [1, 0, 0], sizes = [1, 8, 128], strides = [1, 1, 1]} : vector<9x8x128xf32> to vector<1x8x128xf32>
    %10 = vector.shape_cast %9 : vector<1x8x128xf32> to vector<8x128xf32>
    %11 = arith.mulf %8, %10 : vector<8x128xf32>
    %12 = arith.addf %6, %11 : vector<8x128xf32>
    %13 = vector.extract_strided_slice %0 {offsets = [2, 0, 0], sizes = [1, 8, 128], strides = [1, 1, 1]} : vector<9x8x128xf32> to vector<1x8x128xf32>
    %14 = vector.shape_cast %13 : vector<1x8x128xf32> to vector<8x128xf32>
    %15 = vector.extract_strided_slice %1 {offsets = [2, 0, 0], sizes = [1, 8, 128], strides = [1, 1, 1]} : vector<9x8x128xf32> to vector<1x8x128xf32>
    %16 = vector.shape_cast %15 : vector<1x8x128xf32> to vector<8x128xf32>
    %17 = arith.mulf %14, %16 : vector<8x128xf32>
    %18 = arith.addf %12, %17 : vector<8x128xf32>
    %c0_5 = arith.constant 0 : index
    %c0_6 = arith.constant 0 : index
    %c0_7 = arith.constant 0 : index
    %19 = vector.load %arg3[%c0_5, %c0_6, %c0_7] : memref<9x8x128xf32, #tpu.memory_space<vmem>>, vector<1x8x128xf32>
    %20 = vector.shape_cast %19 : vector<1x8x128xf32> to vector<8x128xf32>
    %21 = vector.shape_cast %18 : vector<8x128xf32> to vector<1x8x128xf32>
    tpu.vector_store %arg3[%c0_5, %c0_6, %c0_7], %21 {strides = array<i32>} : memref<9x8x128xf32, #tpu.memory_space<vmem>>, vector<1x8x128xf32>,
    %22 = vector.extract_strided_slice %0 {offsets = [0, 0, 0], sizes = [1, 8, 128], strides = [1, 1, 1]} : vector<9x8x128xf32> to vector<1x8x128xf32>
    %23 = vector.shape_cast %22 : vector<1x8x128xf32> to vector<8x128xf32>
    %24 = vector.extract_strided_slice %1 {offsets = [3, 0, 0], sizes = [1, 8, 128], strides = [1, 1, 1]} : vector<9x8x128xf32> to vector<1x8x128xf32>
    %25 = vector.shape_cast %24 : vector<1x8x128xf32> to vector<8x128xf32>
    %26 = arith.mulf %23, %25 : vector<8x128xf32>
    %27 = vector.extract_strided_slice %0 {offsets = [1, 0, 0], sizes = [1, 8, 128], strides = [1, 1, 1]} : vector<9x8x128xf32> to vector<1x8x128xf32>
    %28 = vector.shape_cast %27 : vector<1x8x128xf32> to vector<8x128xf32>
    %29 = vector.extract_strided_slice %1 {offsets = [4, 0, 0], sizes = [1, 8, 128], strides = [1, 1, 1]} : vector<9x8x128xf32> to vector<1x8x128xf32>
    %30 = vector.shape_cast %29 : vector<1x8x128xf32> to vector<8x128xf32>
    %31 = arith.mulf %28, %30 : vector<8x128xf32>
    %32 = arith.addf %26, %31 : vector<8x128xf32>
    %33 = vector.extract_strided_slice %0 {offsets = [2, 0, 0], sizes = [1, 8, 128], strides = [1, 1, 1]} : vector<9x8x128xf32> to vector<1x8x128xf32>
    %34 = vector.shape_cast %33 : vector<1x8x128xf32> to vector<8x128xf32>
    %35 = vector.extract_strided_slice %1 {offsets = [5, 0, 0], sizes = [1, 8, 128], strides = [1, 1, 1]} : vector<9x8x128xf32> to vector<1x8x128xf32>
    %36 = vector.shape_cast %35 : vector<1x8x128xf32> to vector<8x128xf32>
    %37 = arith.mulf %34, %36 : vector<8x128xf32>
    %38 = arith.addf %32, %37 : vector<8x128xf32>
    %c1 = arith.constant 1 : index
    %c0_8 = arith.constant 0 : index
    %c0_9 = arith.constant 0 : index
    %39 = vector.load %arg3[%c1, %c0_8, %c0_9] : memref<9x8x128xf32, #tpu.memory_space<vmem>>, vector<1x8x128xf32>
    %40 = vector.shape_cast %39 : vector<1x8x128xf32> to vector<8x128xf32>
    %41 = vector.shape_cast %38 : vector<8x128xf32> to vector<1x8x128xf32>
    tpu.vector_store %arg3[%c1, %c0_8, %c0_9], %41 {strides = array<i32>} : memref<9x8x128xf32, #tpu.memory_space<vmem>>, vector<1x8x128xf32>,
    %42 = vector.extract_strided_slice %0 {offsets = [0, 0, 0], sizes = [1, 8, 128], strides = [1, 1, 1]} : vector<9x8x128xf32> to vector<1x8x128xf32>
    %43 = vector.shape_cast %42 : vector<1x8x128xf32> to vector<8x128xf32>
    %44 = vector.extract_strided_slice %1 {offsets = [6, 0, 0], sizes = [1, 8, 128], strides = [1, 1, 1]} : vector<9x8x128xf32> to vector<1x8x128xf32>
    %45 = vector.shape_cast %44 : vector<1x8x128xf32> to vector<8x128xf32>
    %46 = arith.mulf %43, %45 : vector<8x128xf32>
    %47 = vector.extract_strided_slice %0 {offsets = [1, 0, 0], sizes = [1, 8, 128], strides = [1, 1, 1]} : vector<9x8x128xf32> to vector<1x8x128xf32>
    %48 = vector.shape_cast %47 : vector<1x8x128xf32> to vector<8x128xf32>
    %49 = vector.extract_strided_slice %1 {offsets = [7, 0, 0], sizes = [1, 8, 128], strides = [1, 1, 1]} : vector<9x8x128xf32> to vector<1x8x128xf32>
    %50 = vector.shape_cast %49 : vector<1x8x128xf32> to vector<8x128xf32>
    %51 = arith.mulf %48, %50 : vector<8x128xf32>
    %52 = arith.addf %46, %51 : vector<8x128xf32>
    %53 = vector.extract_strided_slice %0 {offsets = [2, 0, 0], sizes = [1, 8, 128], strides = [1, 1, 1]} : vector<9x8x128xf32> to vector<1x8x128xf32>
    %54 = vector.shape_cast %53 : vector<1x8x128xf32> to vector<8x128xf32>
    %55 = vector.extract_strided_slice %1 {offsets = [8, 0, 0], sizes = [1, 8, 128], strides = [1, 1, 1]} : vector<9x8x128xf32> to vector<1x8x128xf32>
    %56 = vector.shape_cast %55 : vector<1x8x128xf32> to vector<8x128xf32>
    %57 = arith.mulf %54, %56 : vector<8x128xf32>
    %58 = arith.addf %52, %57 : vector<8x128xf32>
    %c2 = arith.constant 2 : index
    %c0_10 = arith.constant 0 : index
    %c0_11 = arith.constant 0 : index
    %59 = vector.load %arg3[%c2, %c0_10, %c0_11] : memref<9x8x128xf32, #tpu.memory_space<vmem>>, vector<1x8x128xf32>
    %60 = vector.shape_cast %59 : vector<1x8x128xf32> to vector<8x128xf32>
    %61 = vector.shape_cast %58 : vector<8x128xf32> to vector<1x8x128xf32>
    tpu.vector_store %arg3[%c2, %c0_10, %c0_11], %61 {strides = array<i32>} : memref<9x8x128xf32, #tpu.memory_space<vmem>>, vector<1x8x128xf32>,
    %62 = vector.extract_strided_slice %0 {offsets = [3, 0, 0], sizes = [1, 8, 128], strides = [1, 1, 1]} : vector<9x8x128xf32> to vector<1x8x128xf32>
    %63 = vector.shape_cast %62 : vector<1x8x128xf32> to vector<8x128xf32>
    %64 = vector.extract_strided_slice %1 {offsets = [0, 0, 0], sizes = [1, 8, 128], strides = [1, 1, 1]} : vector<9x8x128xf32> to vector<1x8x128xf32>
    %65 = vector.shape_cast %64 : vector<1x8x128xf32> to vector<8x128xf32>
    %66 = arith.mulf %63, %65 : vector<8x128xf32>
    %67 = vector.extract_strided_slice %0 {offsets = [4, 0, 0], sizes = [1, 8, 128], strides = [1, 1, 1]} : vector<9x8x128xf32> to vector<1x8x128xf32>
    %68 = vector.shape_cast %67 : vector<1x8x128xf32> to vector<8x128xf32>
    %69 = vector.extract_strided_slice %1 {offsets = [1, 0, 0], sizes = [1, 8, 128], strides = [1, 1, 1]} : vector<9x8x128xf32> to vector<1x8x128xf32>
    %70 = vector.shape_cast %69 : vector<1x8x128xf32> to vector<8x128xf32>
    %71 = arith.mulf %68, %70 : vector<8x128xf32>
    %72 = arith.addf %66, %71 : vector<8x128xf32>
    %73 = vector.extract_strided_slice %0 {offsets = [5, 0, 0], sizes = [1, 8, 128], strides = [1, 1, 1]} : vector<9x8x128xf32> to vector<1x8x128xf32>
    %74 = vector.shape_cast %73 : vector<1x8x128xf32> to vector<8x128xf32>
    %75 = vector.extract_strided_slice %1 {offsets = [2, 0, 0], sizes = [1, 8, 128], strides = [1, 1, 1]} : vector<9x8x128xf32> to vector<1x8x128xf32>
    %76 = vector.shape_cast %75 : vector<1x8x128xf32> to vector<8x128xf32>
    %77 = arith.mulf %74, %76 : vector<8x128xf32>
    %78 = arith.addf %72, %77 : vector<8x128xf32>
    %c3 = arith.constant 3 : index
    %c0_12 = arith.constant 0 : index
    %c0_13 = arith.constant 0 : index
    %79 = vector.load %arg3[%c3, %c0_12, %c0_13] : memref<9x8x128xf32, #tpu.memory_space<vmem>>, vector<1x8x128xf32>
    %80 = vector.shape_cast %79 : vector<1x8x128xf32> to vector<8x128xf32>
    %81 = vector.shape_cast %78 : vector<8x128xf32> to vector<1x8x128xf32>
    tpu.vector_store %arg3[%c3, %c0_12, %c0_13], %81 {strides = array<i32>} : memref<9x8x128xf32, #tpu.memory_space<vmem>>, vector<1x8x128xf32>,
    %82 = vector.extract_strided_slice %0 {offsets = [3, 0, 0], sizes = [1, 8, 128], strides = [1, 1, 1]} : vector<9x8x128xf32> to vector<1x8x128xf32>
    %83 = vector.shape_cast %82 : vector<1x8x128xf32> to vector<8x128xf32>
    %84 = vector.extract_strided_slice %1 {offsets = [3, 0, 0], sizes = [1, 8, 128], strides = [1, 1, 1]} : vector<9x8x128xf32> to vector<1x8x128xf32>
    %85 = vector.shape_cast %84 : vector<1x8x128xf32> to vector<8x128xf32>
    %86 = arith.mulf %83, %85 : vector<8x128xf32>
    %87 = vector.extract_strided_slice %0 {offsets = [4, 0, 0], sizes = [1, 8, 128], strides = [1, 1, 1]} : vector<9x8x128xf32> to vector<1x8x128xf32>
    %88 = vector.shape_cast %87 : vector<1x8x128xf32> to vector<8x128xf32>
    %89 = vector.extract_strided_slice %1 {offsets = [4, 0, 0], sizes = [1, 8, 128], strides = [1, 1, 1]} : vector<9x8x128xf32> to vector<1x8x128xf32>
    %90 = vector.shape_cast %89 : vector<1x8x128xf32> to vector<8x128xf32>
    %91 = arith.mulf %88, %90 : vector<8x128xf32>
    %92 = arith.addf %86, %91 : vector<8x128xf32>
    %93 = vector.extract_strided_slice %0 {offsets = [5, 0, 0], sizes = [1, 8, 128], strides = [1, 1, 1]} : vector<9x8x128xf32> to vector<1x8x128xf32>
    %94 = vector.shape_cast %93 : vector<1x8x128xf32> to vector<8x128xf32>
    %95 = vector.extract_strided_slice %1 {offsets = [5, 0, 0], sizes = [1, 8, 128], strides = [1, 1, 1]} : vector<9x8x128xf32> to vector<1x8x128xf32>
    %96 = vector.shape_cast %95 : vector<1x8x128xf32> to vector<8x128xf32>
    %97 = arith.mulf %94, %96 : vector<8x128xf32>
    %98 = arith.addf %92, %97 : vector<8x128xf32>
    %c4 = arith.constant 4 : index
    %c0_14 = arith.constant 0 : index
    %c0_15 = arith.constant 0 : index
    %99 = vector.load %arg3[%c4, %c0_14, %c0_15] : memref<9x8x128xf32, #tpu.memory_space<vmem>>, vector<1x8x128xf32>
    %100 = vector.shape_cast %99 : vector<1x8x128xf32> to vector<8x128xf32>
    %101 = vector.shape_cast %98 : vector<8x128xf32> to vector<1x8x128xf32>
    tpu.vector_store %arg3[%c4, %c0_14, %c0_15], %101 {strides = array<i32>} : memref<9x8x128xf32, #tpu.memory_space<vmem>>, vector<1x8x128xf32>,
    %102 = vector.extract_strided_slice %0 {offsets = [3, 0, 0], sizes = [1, 8, 128], strides = [1, 1, 1]} : vector<9x8x128xf32> to vector<1x8x128xf32>
    %103 = vector.shape_cast %102 : vector<1x8x128xf32> to vector<8x128xf32>
    %104 = vector.extract_strided_slice %1 {offsets = [6, 0, 0], sizes = [1, 8, 128], strides = [1, 1, 1]} : vector<9x8x128xf32> to vector<1x8x128xf32>
    %105 = vector.shape_cast %104 : vector<1x8x128xf32> to vector<8x128xf32>
    %106 = arith.mulf %103, %105 : vector<8x128xf32>
    %107 = vector.extract_strided_slice %0 {offsets = [4, 0, 0], sizes = [1, 8, 128], strides = [1, 1, 1]} : vector<9x8x128xf32> to vector<1x8x128xf32>
    %108 = vector.shape_cast %107 : vector<1x8x128xf32> to vector<8x128xf32>
    %109 = vector.extract_strided_slice %1 {offsets = [7, 0, 0], sizes = [1, 8, 128], strides = [1, 1, 1]} : vector<9x8x128xf32> to vector<1x8x128xf32>
    %110 = vector.shape_cast %109 : vector<1x8x128xf32> to vector<8x128xf32>
    %111 = arith.mulf %108, %110 : vector<8x128xf32>
    %112 = arith.addf %106, %111 : vector<8x128xf32>
    %113 = vector.extract_strided_slice %0 {offsets = [5, 0, 0], sizes = [1, 8, 128], strides = [1, 1, 1]} : vector<9x8x128xf32> to vector<1x8x128xf32>
    %114 = vector.shape_cast %113 : vector<1x8x128xf32> to vector<8x128xf32>
    %115 = vector.extract_strided_slice %1 {offsets = [8, 0, 0], sizes = [1, 8, 128], strides = [1, 1, 1]} : vector<9x8x128xf32> to vector<1x8x128xf32>
    %116 = vector.shape_cast %115 : vector<1x8x128xf32> to vector<8x128xf32>
    %117 = arith.mulf %114, %116 : vector<8x128xf32>
    %118 = arith.addf %112, %117 : vector<8x128xf32>
    %c5 = arith.constant 5 : index
    %c0_16 = arith.constant 0 : index
    %c0_17 = arith.constant 0 : index
    %119 = vector.load %arg3[%c5, %c0_16, %c0_17] : memref<9x8x128xf32, #tpu.memory_space<vmem>>, vector<1x8x128xf32>
    %120 = vector.shape_cast %119 : vector<1x8x128xf32> to vector<8x128xf32>
    %121 = vector.shape_cast %118 : vector<8x128xf32> to vector<1x8x128xf32>
    tpu.vector_store %arg3[%c5, %c0_16, %c0_17], %121 {strides = array<i32>} : memref<9x8x128xf32, #tpu.memory_space<vmem>>, vector<1x8x128xf32>,
    %122 = vector.extract_strided_slice %0 {offsets = [6, 0, 0], sizes = [1, 8, 128], strides = [1, 1, 1]} : vector<9x8x128xf32> to vector<1x8x128xf32>
    %123 = vector.shape_cast %122 : vector<1x8x128xf32> to vector<8x128xf32>
    %124 = vector.extract_strided_slice %1 {offsets = [0, 0, 0], sizes = [1, 8, 128], strides = [1, 1, 1]} : vector<9x8x128xf32> to vector<1x8x128xf32>
    %125 = vector.shape_cast %124 : vector<1x8x128xf32> to vector<8x128xf32>
    %126 = arith.mulf %123, %125 : vector<8x128xf32>
    %127 = vector.extract_strided_slice %0 {offsets = [7, 0, 0], sizes = [1, 8, 128], strides = [1, 1, 1]} : vector<9x8x128xf32> to vector<1x8x128xf32>
    %128 = vector.shape_cast %127 : vector<1x8x128xf32> to vector<8x128xf32>
    %129 = vector.extract_strided_slice %1 {offsets = [1, 0, 0], sizes = [1, 8, 128], strides = [1, 1, 1]} : vector<9x8x128xf32> to vector<1x8x128xf32>
    %130 = vector.shape_cast %129 : vector<1x8x128xf32> to vector<8x128xf32>
    %131 = arith.mulf %128, %130 : vector<8x128xf32>
    %132 = arith.addf %126, %131 : vector<8x128xf32>
    %133 = vector.extract_strided_slice %0 {offsets = [8, 0, 0], sizes = [1, 8, 128], strides = [1, 1, 1]} : vector<9x8x128xf32> to vector<1x8x128xf32>
    %134 = vector.shape_cast %133 : vector<1x8x128xf32> to vector<8x128xf32>
    %135 = vector.extract_strided_slice %1 {offsets = [2, 0, 0], sizes = [1, 8, 128], strides = [1, 1, 1]} : vector<9x8x128xf32> to vector<1x8x128xf32>
    %136 = vector.shape_cast %135 : vector<1x8x128xf32> to vector<8x128xf32>
    %137 = arith.mulf %134, %136 : vector<8x128xf32>
    %138 = arith.addf %132, %137 : vector<8x128xf32>
    %c6 = arith.constant 6 : index
    %c0_18 = arith.constant 0 : index
    %c0_19 = arith.constant 0 : index
    %139 = vector.load %arg3[%c6, %c0_18, %c0_19] : memref<9x8x128xf32, #tpu.memory_space<vmem>>, vector<1x8x128xf32>
    %140 = vector.shape_cast %139 : vector<1x8x128xf32> to vector<8x128xf32>
    %141 = vector.shape_cast %138 : vector<8x128xf32> to vector<1x8x128xf32>
    tpu.vector_store %arg3[%c6, %c0_18, %c0_19], %141 {strides = array<i32>} : memref<9x8x128xf32, #tpu.memory_space<vmem>>, vector<1x8x128xf32>,
    %142 = vector.extract_strided_slice %0 {offsets = [6, 0, 0], sizes = [1, 8, 128], strides = [1, 1, 1]} : vector<9x8x128xf32> to vector<1x8x128xf32>
    %143 = vector.shape_cast %142 : vector<1x8x128xf32> to vector<8x128xf32>
    %144 = vector.extract_strided_slice %1 {offsets = [3, 0, 0], sizes = [1, 8, 128], strides = [1, 1, 1]} : vector<9x8x128xf32> to vector<1x8x128xf32>
    %145 = vector.shape_cast %144 : vector<1x8x128xf32> to vector<8x128xf32>
    %146 = arith.mulf %143, %145 : vector<8x128xf32>
    %147 = vector.extract_strided_slice %0 {offsets = [7, 0, 0], sizes = [1, 8, 128], strides = [1, 1, 1]} : vector<9x8x128xf32> to vector<1x8x128xf32>
    %148 = vector.shape_cast %147 : vector<1x8x128xf32> to vector<8x128xf32>
    %149 = vector.extract_strided_slice %1 {offsets = [4, 0, 0], sizes = [1, 8, 128], strides = [1, 1, 1]} : vector<9x8x128xf32> to vector<1x8x128xf32>
    %150 = vector.shape_cast %149 : vector<1x8x128xf32> to vector<8x128xf32>
    %151 = arith.mulf %148, %150 : vector<8x128xf32>
    %152 = arith.addf %146, %151 : vector<8x128xf32>
    %153 = vector.extract_strided_slice %0 {offsets = [8, 0, 0], sizes = [1, 8, 128], strides = [1, 1, 1]} : vector<9x8x128xf32> to vector<1x8x128xf32>
    %154 = vector.shape_cast %153 : vector<1x8x128xf32> to vector<8x128xf32>
    %155 = vector.extract_strided_slice %1 {offsets = [5, 0, 0], sizes = [1, 8, 128], strides = [1, 1, 1]} : vector<9x8x128xf32> to vector<1x8x128xf32>
    %156 = vector.shape_cast %155 : vector<1x8x128xf32> to vector<8x128xf32>
    %157 = arith.mulf %154, %156 : vector<8x128xf32>
    %158 = arith.addf %152, %157 : vector<8x128xf32>
    %c7 = arith.constant 7 : index
    %c0_20 = arith.constant 0 : index
    %c0_21 = arith.constant 0 : index
    %159 = vector.load %arg3[%c7, %c0_20, %c0_21] : memref<9x8x128xf32, #tpu.memory_space<vmem>>, vector<1x8x128xf32>
    %160 = vector.shape_cast %159 : vector<1x8x128xf32> to vector<8x128xf32>
    %161 = vector.shape_cast %158 : vector<8x128xf32> to vector<1x8x128xf32>
    tpu.vector_store %arg3[%c7, %c0_20, %c0_21], %161 {strides = array<i32>} : memref<9x8x128xf32, #tpu.memory_space<vmem>>, vector<1x8x128xf32>,
    %162 = vector.extract_strided_slice %0 {offsets = [6, 0, 0], sizes = [1, 8, 128], strides = [1, 1, 1]} : vector<9x8x128xf32> to vector<1x8x128xf32>
    %163 = vector.shape_cast %162 : vector<1x8x128xf32> to vector<8x128xf32>
    %164 = vector.extract_strided_slice %1 {offsets = [6, 0, 0], sizes = [1, 8, 128], strides = [1, 1, 1]} : vector<9x8x128xf32> to vector<1x8x128xf32>
    %165 = vector.shape_cast %164 : vector<1x8x128xf32> to vector<8x128xf32>
    %166 = arith.mulf %163, %165 : vector<8x128xf32>
    %167 = vector.extract_strided_slice %0 {offsets = [7, 0, 0], sizes = [1, 8, 128], strides = [1, 1, 1]} : vector<9x8x128xf32> to vector<1x8x128xf32>
    %168 = vector.shape_cast %167 : vector<1x8x128xf32> to vector<8x128xf32>
    %169 = vector.extract_strided_slice %1 {offsets = [7, 0, 0], sizes = [1, 8, 128], strides = [1, 1, 1]} : vector<9x8x128xf32> to vector<1x8x128xf32>
    %170 = vector.shape_cast %169 : vector<1x8x128xf32> to vector<8x128xf32>
    %171 = arith.mulf %168, %170 : vector<8x128xf32>
    %172 = arith.addf %166, %171 : vector<8x128xf32>
    %173 = vector.extract_strided_slice %0 {offsets = [8, 0, 0], sizes = [1, 8, 128], strides = [1, 1, 1]} : vector<9x8x128xf32> to vector<1x8x128xf32>
    %174 = vector.shape_cast %173 : vector<1x8x128xf32> to vector<8x128xf32>
    %175 = vector.extract_strided_slice %1 {offsets = [8, 0, 0], sizes = [1, 8, 128], strides = [1, 1, 1]} : vector<9x8x128xf32> to vector<1x8x128xf32>
    %176 = vector.shape_cast %175 : vector<1x8x128xf32> to vector<8x128xf32>
    %177 = arith.mulf %174, %176 : vector<8x128xf32>
    %178 = arith.addf %172, %177 : vector<8x128xf32>
    %c8 = arith.constant 8 : index
    %c0_22 = arith.constant 0 : index
    %c0_23 = arith.constant 0 : index
    %179 = vector.load %arg3[%c8, %c0_22, %c0_23] : memref<9x8x128xf32, #tpu.memory_space<vmem>>, vector<1x8x128xf32>
    %180 = vector.shape_cast %179 : vector<1x8x128xf32> to vector<8x128xf32>
    %181 = vector.shape_cast %178 : vector<8x128xf32> to vector<1x8x128xf32>
    tpu.vector_store %arg3[%c8, %c0_22, %c0_23], %181 {strides = array<i32>} : memref<9x8x128xf32, #tpu.memory_space<vmem>>, vector<1x8x128xf32>,
    return
  }
  func.func @transform_0(%arg0: i32) -> (i32, i32, i32) {
    %c0_i32 = arith.constant 0 : i32
    %c0_i32_0 = arith.constant 0 : i32
    %c0_i32_1 = arith.constant 0 : i32
    return %c0_i32, %arg0, %c0_i32_0 : i32, i32, i32
  }
  func.func @transform_1(%arg0: i32) -> (i32, i32, i32) {
    %c0_i32 = arith.constant 0 : i32
    %c0_i32_0 = arith.constant 0 : i32
    %c0_i32_1 = arith.constant 0 : i32
    return %c0_i32, %arg0, %c0_i32_0 : i32, i32, i32
  }
  func.func @transform_2(%arg0: i32) -> (i32, i32, i32) {
    %c0_i32 = arith.constant 0 : i32
    %c0_i32_0 = arith.constant 0 : i32
    %c0_i32_1 = arith.constant 0 : i32
    return %c0_i32, %arg0, %c0_i32_0 : i32, i32, i32
  }
}

</mosaic_0001>

<llo_original>
// kernel: tensor_prod_bare.1
$region0: #{tensor_prod_bare.1}
  #allocation0 [shape = 'u32[]', space=smem, size = 0x4, offset = 0x4, fixed_abs, tag = 'smem constant byte address 0x4 - core index']
  #allocation1 [shape = 'u32[144,128]{1,0:T(1,128)}', space=vmem, size = 0x12000, scoped, tag = 'internal scratch']
  %s0 = inlined_call_operand.vmem [shape: f32[9,8,128], index: 0, kind: input, shape index: {}]
  %s1 = inlined_call_operand.vmem [shape: f32[9,8,128], index: 1, kind: input, shape index: {}]
  %s2 = inlined_call_operand.vmem [shape: f32[9,8,128], index: 2, kind: output, shape index: {}]
  %s3 = sld [smem:[#allocation0]]
  $region18: #{tensor_prod_bare.1} parent=0
    _
  %s5 = ssub.s32 1, %s3
  %s6 = scalar_select 0, %s5, %s3
  // Predicated region
  $region2: #{tensor_prod_bare.1} parent=0 // pred_check
    _
  $region3: #{tensor_prod_bare.1} parent=0 // pred_check_branch
    %8 = sbr.rel (0) target = $region5
  $region4: #{tensor_prod_bare.1} parent=0 // pred_region
    _
  $region5: #{tensor_prod_bare.1} parent=0 // pred_fallthru
    _
  // Predicated region
  $region6: #{tensor_prod_bare.1} parent=0 // pred_check
    _
  $region7: #{tensor_prod_bare.1} parent=0 // pred_check_branch
    %10 = sbr.rel (0) target = $region9
  $region8: #{tensor_prod_bare.1} parent=0 // pred_region
    _
  $region9: #{tensor_prod_bare.1} parent=0 // pred_fallthru
    _
  %v11 = vld [vmem:[%s0] sm:$0xff]
  %v12 = vld [vmem:[%s0 + $0x8] sm:$0xff]
  %v13 = vld [vmem:[%s0 + $0x10] sm:$0xff]
  %v14 = vld [vmem:[%s0 + $0x18] sm:$0xff]
  %v15 = vld [vmem:[%s0 + $0x20] sm:$0xff]
  %v16 = vld [vmem:[%s0 + $0x28] sm:$0xff]
  %v17 = vld [vmem:[%s0 + $0x30] sm:$0xff]
  %v18 = vld [vmem:[%s0 + $0x38] sm:$0xff]
  %v19 = vld [vmem:[%s0 + $0x40] sm:$0xff]
  %v20 = vld [vmem:[%s1] sm:$0xff]
  %v21 = vld [vmem:[%s1 + $0x8] sm:$0xff]
  %v22 = vld [vmem:[%s1 + $0x10] sm:$0xff]
  %v23 = vld [vmem:[%s1 + $0x18] sm:$0xff]
  %v24 = vld [vmem:[%s1 + $0x20] sm:$0xff]
  %v25 = vld [vmem:[%s1 + $0x28] sm:$0xff]
  %v26 = vld [vmem:[%s1 + $0x30] sm:$0xff]
  %v27 = vld [vmem:[%s1 + $0x38] sm:$0xff]
  %v28 = vld [vmem:[%s1 + $0x40] sm:$0xff]
  %v29 = vmul.f32 %v11, %v20
  %v30 = vmul.f32 %v12, %v21
  %v31 = vadd.f32 %v29, %v30
  %v32 = vmul.f32 %v13, %v22
  %v33 = vadd.f32 %v31, %v32
  %34 = vst [vmem:[%s2] sm:$0xff] %v33
  %v35 = vmul.f32 %v11, %v23
  %v36 = vmul.f32 %v12, %v24
  %v37 = vadd.f32 %v35, %v36
  %v38 = vmul.f32 %v13, %v25
  %v39 = vadd.f32 %v37, %v38
  %s40 = scalar_lea.vmem %s2, 8
  %41 = vst [vmem:[%s40] sm:$0xff] %v39
  %v42 = vmul.f32 %v11, %v26
  %v43 = vmul.f32 %v12, %v27
  %v44 = vadd.f32 %v42, %v43
  %v45 = vmul.f32 %v13, %v28
  %v46 = vadd.f32 %v44, %v45
  %s47 = scalar_lea.vmem %s2, 16
  %48 = vst [vmem:[%s47] sm:$0xff] %v46
  %v49 = vmul.f32 %v14, %v20
  %v50 = vmul.f32 %v15, %v21
  %v51 = vadd.f32 %v49, %v50
  %v52 = vmul.f32 %v16, %v22
  %v53 = vadd.f32 %v51, %v52
  %s54 = scalar_lea.vmem %s2, 24
  %55 = vst [vmem:[%s54] sm:$0xff] %v53
  %v56 = vmul.f32 %v14, %v23
  %v57 = vmul.f32 %v15, %v24
  %v58 = vadd.f32 %v56, %v57
  %v59 = vmul.f32 %v16, %v25
  %v60 = vadd.f32 %v58, %v59
  %s61 = scalar_lea.vmem %s2, 32
  %62 = vst [vmem:[%s61] sm:$0xff] %v60
  %v63 = vmul.f32 %v14, %v26
  %v64 = vmul.f32 %v15, %v27
  %v65 = vadd.f32 %v63, %v64
  %v66 = vmul.f32 %v16, %v28
  %v67 = vadd.f32 %v65, %v66
  %s68 = scalar_lea.vmem %s2, 40
  %69 = vst [vmem:[%s68] sm:$0xff] %v67
  %v70 = vmul.f32 %v17, %v20
  %v71 = vmul.f32 %v18, %v21
  %v72 = vadd.f32 %v70, %v71
  %v73 = vmul.f32 %v19, %v22
  %v74 = vadd.f32 %v72, %v73
  %s75 = scalar_lea.vmem %s2, 48
  %76 = vst [vmem:[%s75] sm:$0xff] %v74
  %v77 = vmul.f32 %v17, %v23
  %v78 = vmul.f32 %v18, %v24
  %v79 = vadd.f32 %v77, %v78
  %v80 = vmul.f32 %v19, %v25
  %v81 = vadd.f32 %v79, %v80
  %s82 = scalar_lea.vmem %s2, 56
  %83 = vst [vmem:[%s82] sm:$0xff] %v81
  %v84 = vmul.f32 %v17, %v26
  %v85 = vmul.f32 %v18, %v27
  %v86 = vadd.f32 %v84, %v85
  %v87 = vmul.f32 %v19, %v28
  %v88 = vadd.f32 %v86, %v87
  %s89 = scalar_lea.vmem %s2, 64
  %90 = vst [vmem:[%s89] sm:$0xff] %v88
  // Predicated region
  $region10: #{tensor_prod_bare.1} parent=0 // pred_check
    _
  $region11: #{tensor_prod_bare.1} parent=0 // pred_check_branch
    %92 = sbr.rel (0) target = $region13
  $region12: #{tensor_prod_bare.1} parent=0 // pred_region
    _
  $region13: #{tensor_prod_bare.1} parent=0 // pred_fallthru
    _
  // Predicated region
  $region14: #{tensor_prod_bare.1} parent=0 // pred_check
    _
  $region15: #{tensor_prod_bare.1} parent=0 // pred_check_branch
    %94 = sbr.rel (0) target = $region17
  $region16: #{tensor_prod_bare.1} parent=0 // pred_region
    _
  $region17: #{tensor_prod_bare.1} parent=0 // pred_fallthru
    _

</llo_original>
